<compile_context>
chip_gen: v7x
topology: tpu7x:2x2x1
jax: 0.10.0
libtpu: 0.0.40
codegen_flags: <defaults>
</compile_context>

<pallas_src>
import functools

import numpy as np
import jax
import jax.numpy as jnp
from jax import lax
from jax.experimental import pallas as pl
from jax.experimental.pallas import tpu as pltpu


def _round_up(n, m):
    return ((n + m - 1) // m) * m


def _pick_group(BC, H):
    """Maps per grid step: fill ~256 MXU rows but keep >=2 grid steps (v7x)."""
    want = max(1, -(-256 // H))                   # ceil(256 / H)
    cap = max(1, BC // 2) if BC >= 2 else 1       # leave >=2 steps for megacore
    cap = min(want, cap, BC)
    g = 1
    for d in range(1, cap + 1):
        if BC % d == 0:
            g = d
    return g


def _iv_pool_kernel(x_ref, band_ref, out_ref, *, K):
    """Diagonal of the KxK average pool for G contact maps at once.

    x_ref:    (G, H, W) in input dtype (bf16 fast path on the MXU)
    band_ref: (W, Lp) constant 0/1 banded matrix, band[w, i] = 1 iff
              i <= w < i + K and i < L (columns i >= L are all-zero so the
              padded output lanes come out exactly zero -> exact global mean).
    out_ref:  (G, 1, Lp) f32, out[g, 0, i] = mean(x_g[i:i+K, i:i+K]).
    """
    G, H, W = x_ref.shape
    Lp = out_ref.shape[-1]

    band = band_ref[...]                                   # (W, Lp), 0/1

    # One big MXU matmul per step: sliding row-window sums for all G maps.
    x2 = x_ref[...].reshape(G * H, W)                      # collapse maps
    rowwin = jnp.dot(x2, band,
                     preferred_element_type=jnp.float32)   # (G*H, Lp) f32

    # H == W, so the same band selects rows i..i+K-1 of column i: the KxK
    # diagonal window sum is a masked sublane reduction per map.
    rw3 = rowwin.reshape(G, H, Lp)
    mask = band.astype(jnp.float32)                        # tiny (W, Lp) cast
    win = jnp.sum(rw3 * mask[None, :, :], axis=1, keepdims=True)   # (G, 1, Lp)
    out_ref[...] = win * (1.0 / float(K * K))


def _finalize_kernel(ivp_ref, iv_ref, dv_ref, bnd_ref, *, L, M, D, inv_count):
    """Global log2 normalization, avg-pool difference (MXU), boundary mask."""
    ivp = ivp_ref[...]                                     # (BC, Lp), zero-padded
    BC, Lp = ivp.shape
    Mp = dv_ref.shape[-1]

    # Global mean over all (b, c, position); pad lanes are exactly zero so the
    # padded sum is the true sum.  log2(mean) computed once on a (1,1) tile.
    mean2d = jnp.sum(ivp, axis=(0, 1), keepdims=True) * inv_count   # (1, 1)
    log2_mean = jnp.log2(mean2d)                                    # (1, 1)

    col_l = lax.broadcasted_iota(jnp.int32, (BC, Lp), 1)
    valid_l = col_l < L
    # log2(x) - log2(mean): no per-element divide, no log2(0) on pad lanes.
    iv = jnp.where(valid_l,
                   jnp.log2(jnp.where(valid_l, ivp, 1.0)) - log2_mean,
                   0.0)
    iv_ref[...] = iv                                        # single full store

    # dv[:, j] = mean(iv[:, D+j:2D+j]) - mean(iv[:, j:D+j]) as one MXU matmul
    # against a +-1/D stencil; a second stencil (offset +2) gives dv[j+2]
    # directly, so no cross-lane shifts/slices are needed.  Stencil columns
    # j (+off) >= M are zero -> outputs are lane-dense and zero-padded.
    l_idx = lax.broadcasted_iota(jnp.int32, (Lp, Mp), 0)
    j_idx = lax.broadcasted_iota(jnp.int32, (Lp, Mp), 1)

    def diff_coeff(off):
        jj = j_idx + off
        ok = jj < M
        top = (l_idx >= jj + D) & (l_idx < jj + 2 * D)
        bot = (l_idx >= jj) & (l_idx < jj + D)
        c = (top.astype(jnp.float32) - bot.astype(jnp.float32)) * (1.0 / D)
        return jnp.where(ok, c, 0.0)

    dv = jnp.dot(iv, diff_coeff(0), preferred_element_type=jnp.float32)
    dv2 = jnp.dot(iv, diff_coeff(2), preferred_element_type=jnp.float32)
    dv_ref[...] = dv                                        # single full store

    # Boundary predicate: (dv[j] < 0) & (dv[j+2] > 0) for j in [0, M-2).
    col_m = lax.broadcasted_iota(jnp.int32, (BC, Mp), 1)
    bnd_ref[...] = ((col_m < M - 2) & (dv < 0) & (dv2 > 0)).astype(jnp.int32)


def compute_insulation(x, window_radius=8, deriv_size=8):
    """Pallas equivalent of computeInsulation.forward.

    Returns (iv, dv, boundaries): iv (B, C, L) and dv (B, C, M) device arrays
    and a list (length B) of variable-length numpy boundary index arrays.
    `x` may be float32 or bfloat16 (bf16 halves HBM traffic and takes the
    MXU's native high-throughput path; accumulation is always f32).
    """
    B, C, H, W = x.shape
    assert H == W, "insulation expects square contact maps"
    K = 2 * window_radius + 1
    D = deriv_size
    L = H - K + 1
    M = L - 2 * D + 1
    assert L > 0 and M > 2, "input too small for given window/deriv sizes"
    BC = B * C
    Lp = _round_up(L, 128)          # lane-dense, unmasked stores
    Mp = _round_up(M, 128)

    # Hoisted constant banded 0/1 matrix (built once on host, passed in x's
    # dtype so the MXU runs its bf16 path when x is bf16; 0/1 is exact).
    # Keep the (i < L) masking: pad columns MUST stay all-zero or the global
    # mean in pass 2 silently drifts.
    w_idx = np.arange(W)[:, None]
    i_idx = np.arange(Lp)[None, :]
    band_host = (w_idx >= i_idx) & (w_idx < i_idx + K) & (i_idx < L)
    band = jnp.asarray(band_host, dtype=x.dtype)

    x3 = x.reshape(BC, H, W)

    # Batch G maps per grid step so the MXU rows are filled and per-step grid
    # overhead is amortised; keep >= 2 steps when possible for v7x megacore.
    G = _pick_group(BC, H)

    # TODO(synk): at real Hi-C sizes (H >= 4k) replace the whole-map block with
    # overlapping diagonal-band tiles: per step DMA only the (tile_L+K-1)^2
    # bf16 sub-block around the diagonal (manual make_async_copy double
    # buffering, memory_space=pl.ANY) with a per-tile band — tile_L ~512 on
    # v7x (64 MiB VMEM), ~1024-2048 on v5e/v6e (raise vmem_limit_bytes toward
    # ~100 MiB); on v5e also benchmark replacing the banded matmul with K
    # unrolled shifted adds (weak 4x128 MXU).  At demo sizes one map fits
    # trivially, so the simple whole-map BlockSpec path below is used.
    ivp = pl.pallas_call(
        functools.partial(_iv_pool_kernel, K=K),
        grid=(BC // G,),
        in_specs=[
            pl.BlockSpec((G, H, W), lambda n: (n, 0, 0)),
            pl.BlockSpec((W, Lp), lambda n: (0, 0)),      # same block every step
        ],
        out_specs=pl.BlockSpec((G, 1, Lp), lambda n: (n, 0, 0)),
        out_shape=jax.ShapeDtypeStruct((BC, 1, Lp), jnp.float32),
        compiler_params=pltpu.CompilerParams(
            dimension_semantics=("parallel",),            # megacore on v7x
            vmem_limit_bytes=32 * 1024 * 1024,
        ),
    )(x3, band)

    iv_p, dv_p, bnd_p = pl.pallas_call(
        functools.partial(_finalize_kernel, L=L, M=M, D=D,
                          inv_count=1.0 / float(BC * L)),
        grid=(1,),
        in_specs=[pl.BlockSpec((BC, Lp), lambda i: (0, 0))],
        out_specs=(
            pl.BlockSpec((BC, Lp), lambda i: (0, 0)),
            pl.BlockSpec((BC, Mp), lambda i: (0, 0)),
            pl.BlockSpec((BC, Mp), lambda i: (0, 0)),
        ),
        out_shape=(
            jax.ShapeDtypeStruct((BC, Lp), jnp.float32),
            jax.ShapeDtypeStruct((BC, Mp), jnp.float32),
            jax.ShapeDtypeStruct((BC, Mp), jnp.int32),
        ),
        compiler_params=pltpu.CompilerParams(
            dimension_semantics=("arbitrary",),
            vmem_limit_bytes=32 * 1024 * 1024,
        ),
    )(ivp.reshape(BC, Lp))

    iv = iv_p[:, :L].reshape(B, C, L)
    dv = dv_p[:, :M].reshape(B, C, M)

    # TODO(synk): torch.where gives ragged per-batch index lists (dynamic
    # shapes); the 0/1 boundary mask is computed on-device, only the ragged
    # index extraction stays host-side.
    bnd_np = np.asarray(bnd_p[:, :M - 2])
    boundaries = [
        np.where(bnd_np[b * C] != 0)[0] + window_radius + deriv_size
        for b in range(B)
    ]
    return iv, dv, boundaries


def _reference_numpy(x, window_radius, deriv_size):
    """Straightforward numpy re-implementation of the PyTorch forward."""
    K = 2 * window_radius + 1
    D = deriv_size
    B, C, H, W = x.shape
    L = H - K + 1
    M = L - 2 * D + 1
    iv_pool = np.zeros((B, C, L), np.float64)
    for b in range(B):
        for c in range(C):
            for i in range(L):
                iv_pool[b, c, i] = x[b, c, i:i + K, i:i + K].mean()
    iv = np.log2(iv_pool / iv_pool.mean())
    top = np.zeros((B, C, M), np.float64)
    bot = np.zeros((B, C, M), np.float64)
    for j in range(M):
        top[:, :, j] = iv[:, :, D + j:D + j + D].mean(-1)
        bot[:, :, j] = iv[:, :, j:j + D].mean(-1)
    dv = top - bot
    band = (dv[:, 0, :-2] < 0) & (dv[:, 0, 2:] > 0)
    boundaries = [
        np.where(band[b])[0] + window_radius + deriv_size for b in range(B)
    ]
    return iv, dv, boundaries


if __name__ == "__main__":
    window_radius, deriv_size = 8, 8           # module defaults
    B, C, H, W = 2, 2, 48, 48                  # small square contact maps

    key = jax.random.PRNGKey(0)
    # Strictly positive, contact-map-like input, stored as bf16 in HBM (halves
    # DMA bytes and takes the MXU bf16 path); all accumulation is f32.
    x = jax.random.uniform(key, (B, C, H, W), jnp.float32,
                           minval=0.5, maxval=2.0).astype(jnp.bfloat16)

    iv, dv, boundaries = compute_insulation(x, window_radius, deriv_size)
    jax.block_until_ready((iv, dv))

    x64 = np.asarray(x).astype(np.float64)
    iv_ref, dv_ref, boundaries_ref = _reference_numpy(
        x64, window_radius, deriv_size
    )

    np.testing.assert_allclose(np.asarray(iv), iv_ref, rtol=1e-4, atol=1e-5)
    np.testing.assert_allclose(np.asarray(dv), dv_ref, rtol=1e-4, atol=1e-5)
    assert len(boundaries) == len(boundaries_ref)
    for got, want in zip(boundaries, boundaries_ref):
        np.testing.assert_array_equal(got, want)

    print("KERNEL_OK")
</pallas_src>

<mosaic_0001>
module attributes {stable_mosaic.version = 11 : i64} {
  func.func @_iv_pool_kernel(%arg0: i32, %arg1: memref<2x48x48xbf16, #tpu.memory_space<vmem>>, %arg2: memref<48x128xbf16, #tpu.memory_space<vmem>>, %arg3: memref<2x1x128xf32, #tpu.memory_space<vmem>>) attributes {dimension_semantics = [#tpu.dimension_semantics<parallel>], iteration_bounds = array<i64: 2>, scalar_prefetch = 0 : i64, scratch_operands = 0 : i64, tpu.core_type = #tpu.core_type<tc>, window_params = [{transform_indices = @transform_0, window_bounds = array<i64: 2, 48, 48>}, {pipeline_mode = #tpu.pipeline_mode<synchronous>, transform_indices = @transform_1, window_bounds = array<i64: 48, 128>}, {transform_indices = @transform_2, window_bounds = array<i64: 2, 1, 128>}]} {
    %c0 = arith.constant 0 : index
    %c0_0 = arith.constant 0 : index
    %0 = vector.load %arg2[%c0, %c0_0] : memref<48x128xbf16, #tpu.memory_space<vmem>>, vector<48x128xbf16>
    %c0_1 = arith.constant 0 : index
    %c0_2 = arith.constant 0 : index
    %c0_3 = arith.constant 0 : index
    %1 = vector.load %arg1[%c0_1, %c0_2, %c0_3] : memref<2x48x48xbf16, #tpu.memory_space<vmem>>, vector<2x48x48xbf16>
    %2 = vector.shape_cast %1 : vector<2x48x48xbf16> to vector<96x48xbf16>
    %cst = arith.constant dense<0.000000e+00> : vector<96x128xf32>
    %3 = tpu.matmul %2, %0, %cst {dimension_numbers = #tpu.dot_dimension_numbers<[1], [0], [0], [1], [0, 0, 1, 1], [], []>} : vector<96x48xbf16>, vector<48x128xbf16>, vector<96x128xf32> -> vector<96x128xf32>
    %4 = vector.shape_cast %3 : vector<96x128xf32> to vector<2x48x128xf32>
    %5 = arith.extf %0 : vector<48x128xbf16> to vector<48x128xf32>
    %6 = vector.shape_cast %5 : vector<48x128xf32> to vector<1x48x128xf32>
    %7 = vector.broadcast %6 : vector<1x48x128xf32> to vector<2x48x128xf32>
    %8 = arith.mulf %4, %7 : vector<2x48x128xf32>
    %cst_4 = arith.constant dense<0.000000e+00> : vector<2x128xf32>
    %9 = vector.multi_reduction <add>, %8, %cst_4 [1] : vector<2x48x128xf32> to vector<2x128xf32>
    %10 = vector.shape_cast %9 : vector<2x128xf32> to vector<2x1x128xf32>
    %cst_5 = arith.constant 0.00346020772 : f32
    %11 = vector.broadcast %cst_5 : f32 to vector<2x1x128xf32>
    %12 = arith.mulf %10, %11 : vector<2x1x128xf32>
    %c0_6 = arith.constant 0 : index
    %c0_7 = arith.constant 0 : index
    %c0_8 = arith.constant 0 : index
    %13 = vector.load %arg3[%c0_6, %c0_7, %c0_8] : memref<2x1x128xf32, #tpu.memory_space<vmem>>, vector<2x1x128xf32>
    tpu.vector_store %arg3[%c0_6, %c0_7, %c0_8], %12 {strides = array<i32>} : memref<2x1x128xf32, #tpu.memory_space<vmem>>, vector<2x1x128xf32>,
    return
  }
  func.func @transform_0(%arg0: i32) -> (i32, i32, i32) {
    %c0_i32 = arith.constant 0 : i32
    %c0_i32_0 = arith.constant 0 : i32
    %c0_i32_1 = arith.constant 0 : i32
    return %arg0, %c0_i32, %c0_i32_0 : i32, i32, i32
  }
  func.func @transform_1(%arg0: i32) -> (i32, i32) {
    %c0_i32 = arith.constant 0 : i32
    %c0_i32_0 = arith.constant 0 : i32
    %c0_i32_1 = arith.constant 0 : i32
    return %c0_i32, %c0_i32_0 : i32, i32
  }
  func.func @transform_2(%arg0: i32) -> (i32, i32, i32) {
    %c0_i32 = arith.constant 0 : i32
    %c0_i32_0 = arith.constant 0 : i32
    %c0_i32_1 = arith.constant 0 : i32
    return %arg0, %c0_i32, %c0_i32_0 : i32, i32, i32
  }
}

</mosaic_0001>

<llo_original>
// kernel: tpu_custom_call.1
$region0: #{tpu_custom_call.1}
  #allocation0 [shape = 'u32[]', space=smem, size = 0x4, offset = 0x4, fixed_abs, tag = 'smem constant byte address 0x4 - core index']
  #allocation1 [shape = 'u32[144,128]{1,0:T(1,128)}', space=vmem, size = 0x12000, scoped, tag = 'internal scratch']
  %s0 = inlined_call_operand.hbm [shape: bf16[4,48,48], index: 0, kind: input, shape index: {}]
  %s1 = inlined_call_operand.hbm [shape: bf16[48,128], index: 1, kind: input, shape index: {}]
  %s2 = inlined_call_operand.hbm [shape: f32[4,1,128], index: 2, kind: output, shape index: {}]
  %s3 = sld [smem:[#allocation0]]
  $region49: #{tpu_custom_call.1} parent=0
    _
  %s5 = ssub.s32 1, %s3
  %s6 = scalar_select 0, %s5, %s3
  $region1: #{tpu_custom_call.1} parent=0
    #allocation2 [shape = 'u8[49152]{0}', space=vmem, size = 0xc000, scoped, tag = 'input window, operand 0']
    #allocation3 [shape = 's32[2]{0}', space=sflag, size = 0x8, scoped, tag = 'scoped memory for tpu_custom_call.1']
    #allocation4 [shape = 's32[2]{0}', space=sflag, size = 0x8, scoped, tag = 'scoped memory for tpu_custom_call.1']
    #allocation5 [shape = 'u8[12288]{0}', space=vmem, size = 0x3000, scoped, tag = 'input window, operand 1, single buffered']
    #allocation6 [shape = 's32[1]{0}', space=sflag, size = 0x4, scoped, tag = 'scoped memory for tpu_custom_call.1']
    #allocation7 [shape = 'u8[2048]{0}', space=vmem, size = 0x800, scoped, tag = 'output window, operand 0']
    %7 = vsyncpa [#allocation3], 0
    %s8 = scalar_lea.sflag [#allocation3], 1
    %9 = vsyncpa %s8, 0
    %10 = vsyncpa [#allocation6], 0
    %11 = vsyncpa [#allocation4], 0
    %s12 = scalar_lea.sflag [#allocation4], 1
    %13 = vsyncpa %s12, 0
    loop: start=0, step=1, limit=4
    $region2: #{tpu_custom_call.1} parent=1 // loop_pre_header
      _
    $region3: #{tpu_custom_call.1} parent=1 // loop_header
      %s15 = sphi 0, %s19
      %p16 = scmp.ge.s32.totalorder %s15, 4
      %s25 = sphi 0, %s27
      %s28 = sphi 0, %s25
      %s29 = sphi 0, %s28
      %s45 = sphi 0, %s29
      %s49 = sphi 0, %s49
      %s51 = sphi 0, %s49
      %s52 = sphi 0, %s51
      %s66 = sphi 0, %s52
      %s72 = sphi 0, %s74
      %s75 = sphi 0, %s72
      %s76 = sphi 0, %s75
      %s92 = sphi 0, %s76
    $region4: #{tpu_custom_call.1} parent=1 // loop_header_branch
      %18 = sbr.rel (%p16) target = $region8
    $region5: #{tpu_custom_call.1} parent=1 // loop_body
      %s20 = ssub.s32 %s15, 1
      %s21 = ssub.s32 %s15, 2
      %s22 = sadd.s32 %s15, 1
      %s23 = ssub.s32 %s15, %s22
      %p24 = scmp.eq.s32.totalorder %s23, 0
      %s26 = sadd.s32 %s25, 1
      %s27 = scalar_select %p24, %s25, %s26
      %p30 = pneg %p24
      %p31 = scmp.eq.s32.totalorder %s15, 1
      %p32 = por %p30, %p31
      %p33 = scmp.ne.s32.totalorder %s25, %s28
      %p34 = scmp.eq.s32.totalorder %s15, 0
      %p35 = por %p33, %p34
      %p36 = scmp.ne.s32.totalorder %s25, %s28
      %p37 = scmp.eq.s32.totalorder %s20, 1
      %p38 = por %p36, %p37
      %p39 = scmp.ne.s32.totalorder %s28, %s29
      %p40 = scmp.eq.s32.totalorder %s20, 0
      %p41 = por %p39, %p40
      %p42 = scmp.ne.s32.totalorder %s28, %s29
      %p43 = scmp.eq.s32.totalorder %s21, 1
      %p44 = por %p42, %p43
      %p46 = scmp.ne.s32.totalorder %s29, %s45
      %p47 = scmp.eq.s32.totalorder %s21, 0
      %p48 = por %p46, %p47
      %s50 = sadd.s32 %s49, 1
      %p53 = scmp.eq.s32.totalorder %s15, 1
      %p54 = scmp.ne.s32.totalorder %s49, %s51
      %p55 = scmp.eq.s32.totalorder %s15, 0
      %p56 = por %p54, %p55
      %p57 = scmp.ne.s32.totalorder %s49, %s51
      %p58 = scmp.eq.s32.totalorder %s20, 1
      %p59 = por %p57, %p58
      %p60 = scmp.ne.s32.totalorder %s51, %s52
      %p61 = scmp.eq.s32.totalorder %s20, 0
      %p62 = por %p60, %p61
      %p63 = scmp.ne.s32.totalorder %s51, %s52
      %p64 = scmp.eq.s32.totalorder %s21, 1
      %p65 = por %p63, %p64
      %p67 = scmp.ne.s32.totalorder %s52, %s66
      %p68 = scmp.eq.s32.totalorder %s21, 0
      %p69 = por %p67, %p68
      %s70 = ssub.s32 %s15, %s22
      %p71 = scmp.eq.s32.totalorder %s70, 0
      %s73 = sadd.s32 %s72, 1
      %s74 = scalar_select %p71, %s72, %s73
      %p77 = pneg %p71
      %p78 = scmp.eq.s32.totalorder %s15, 1
      %p79 = por %p77, %p78
      %p80 = scmp.ne.s32.totalorder %s72, %s75
      %p81 = scmp.eq.s32.totalorder %s15, 0
      %p82 = por %p80, %p81
      %p83 = scmp.ne.s32.totalorder %s72, %s75
      %p84 = scmp.eq.s32.totalorder %s20, 1
      %p85 = por %p83, %p84
      %p86 = scmp.ne.s32.totalorder %s75, %s76
      %p87 = scmp.eq.s32.totalorder %s20, 0
      %p88 = por %p86, %p87
      %p89 = scmp.ne.s32.totalorder %s75, %s76
      %p90 = scmp.eq.s32.totalorder %s21, 1
      %p91 = por %p89, %p90
      %p93 = scmp.ne.s32.totalorder %s76, %s92
      %p94 = scmp.eq.s32.totalorder %s21, 0
      %p95 = por %p93, %p94
      %p96 = scmp.le.s32.totalorder 1, %s15
      %p97 = scmp.lt.s32.totalorder %s15, 3
      %p98 = pnand %p96, %p97
      %p99 = pneg %p98
      // Predicated region
      $region9: #{tpu_custom_call.1} parent=5 // pred_check
        _
      $region10: #{tpu_custom_call.1} parent=5 // pred_check_branch
        %101 = sbr.rel (%p98) target = $region12
      $region11: #{tpu_custom_call.1} parent=5 // pred_region
        %s102 = ssub.s32 %s15, 1
        // Predicated region
        $region13: #{tpu_custom_call.1} parent=11 // pred_check
          %p103 = pneg %p62
        $region14: #{tpu_custom_call.1} parent=11 // pred_check_branch
          %105 = sbr.rel (%p103) target = $region16
        $region15: #{tpu_custom_call.1} parent=11 // pred_region
          %s107 = ssub.s32 384, 384
          %108 = vsyncadd [#allocation6], %s107
          %s109 = sshll.u32 [#allocation5], 4
          %s110 = int_to_ptr.vmem [resolvable:$true] %s109
          %115 = dma.hbm_to_vmem [thread:$0]  %s1, 384, %s110, [#allocation6], 64, 64, 4
        $region16: #{tpu_custom_call.1} parent=11 // pred_fallthru
          _
      $region12: #{tpu_custom_call.1} parent=5 // pred_fallthru
        _
      %p116 = scmp.lt.s32.totalorder %s15, 2
      // Predicated region
      $region17: #{tpu_custom_call.1} parent=5 // pred_check
        %p117 = pneg %p116
      $region18: #{tpu_custom_call.1} parent=5 // pred_check_branch
        %119 = sbr.rel (%p117) target = $region20
      $region19: #{tpu_custom_call.1} parent=5 // pred_region
        // Predicated region
        $region21: #{tpu_custom_call.1} parent=19 // pred_check
          %p120 = pneg %p35
        $region22: #{tpu_custom_call.1} parent=19 // pred_check_branch
          %122 = sbr.rel (%p120) target = $region24
        $region23: #{tpu_custom_call.1} parent=19 // pred_region
          %s123 = sand.u32 %s25, 1
          %s124 = scalar_lea.sflag [#allocation3], %s123
          %s125 = sand.u32 %s25, 1
          %s126 = smul.addr %s125, 48
          %s127 = scalar_lea.vmem [#allocation2], %s126
          %s128 = smul.u32 2, %s15
          %s130 = ssub.s32 768, 768
          %131 = vsyncadd %s124, %s130
          %s132 = smul.addr %s128, 6
          %s133 = smul.addr %s132, 64
          %s134 = scalar_lea.hbm %s0, %s133
          %s135 = sshll.u32 %s127, 4
          %s136 = int_to_ptr.vmem [resolvable:$true] %s135
          %141 = dma.hbm_to_vmem [thread:$0]  %s134, 768, %s136, %s124, 64, 64, 4
        $region24: #{tpu_custom_call.1} parent=19 // pred_fallthru
          _
      $region20: #{tpu_custom_call.1} parent=5 // pred_fallthru
        _
      %p142 = scmp.le.s32.totalorder 1, %s15
      %p143 = scmp.lt.s32.totalorder %s15, 3
      %p144 = pnand %p142, %p143
      %p145 = pneg %p144
      // Predicated region
      $region25: #{tpu_custom_call.1} parent=5 // pred_check
        _
      $region26: #{tpu_custom_call.1} parent=5 // pred_check_branch
        %147 = sbr.rel (%p144) target = $region28
      $region27: #{tpu_custom_call.1} parent=5 // pred_region
        %s148 = ssub.s32 %s15, 1
        %s149 = sand.u32 %s28, 1
        %s150 = scalar_lea.sflag [#allocation3], %s149
        %s151 = sand.u32 %s28, 1
        %s152 = smul.addr %s151, 48
        %s153 = scalar_lea.vmem [#allocation2], %s152
        // Predicated region
        $region29: #{tpu_custom_call.1} parent=27 // pred_check
          %p154 = pneg %p41
        $region30: #{tpu_custom_call.1} parent=27 // pred_check_branch
          %156 = sbr.rel (%p154) target = $region32
        $region31: #{tpu_custom_call.1} parent=27 // pred_region
          %157 = dma.done %s150, 768
        $region32: #{tpu_custom_call.1} parent=27 // pred_fallthru
          _
        // Predicated region
        $region33: #{tpu_custom_call.1} parent=27 // pred_check
          %p158 = pneg %p62
        $region34: #{tpu_custom_call.1} parent=27 // pred_check_branch
          %160 = sbr.rel (%p158) target = $region36
        $region35: #{tpu_custom_call.1} parent=27 // pred_region
          %161 = dma.done [#allocation6], 384
        $region36: #{tpu_custom_call.1} parent=27 // pred_fallthru
          _
        %s162 = sand.u32 %s28, 1
        %s163 = scalar_lea.sflag [#allocation3], %s162
        %s164 = sand.u32 %s28, 1
        %s165 = smul.addr %s164, 48
        %s166 = scalar_lea.vmem [#allocation2], %s165
        %p167 = pneg %p41
        %p168 = pneg %p38
        %p169 = pneg %p62
        %p170 = pneg %p59
        %p171 = pneg %p88
        %p172 = pneg %p85
        %s173 = sand.u32 %s75, 1
        %s174 = scalar_lea.sflag [#allocation4], %s173
        %s175 = sand.u32 %s75, 1
        %s176 = smul.addr %s175, 2
        %s177 = scalar_lea.vmem [#allocation7], %s176
        %s178 = smul.u32 2, %s20
        %s179 = smul.u32 2, %s20
        %v181 = vld [vmem:[#allocation5] sm:$0xf]
        %v182 = vld [vmem:[#allocation5 + $0x4] sm:$0xf]
        %v183 = vld [vmem:[#allocation5 + $0x8] sm:$0xf]
        %v184 = vld [vmem:[#allocation5 + $0xc] sm:$0xf]
        %v185 = vld [vmem:[#allocation5 + $0x10] sm:$0xf]
        %v186 = vld [vmem:[#allocation5 + $0x14] sm:$0xf]
        %v187 = vld [vmem:[%s153] sm:$0xf]
        %v188 = vld [vmem:[%s153 + $0x4] sm:$0xf]
        %v189 = vld [vmem:[%s153 + $0x8] sm:$0xf]
        %v190 = vld [vmem:[%s153 + $0xc] sm:$0xf]
        %v191 = vld [vmem:[%s153 + $0x10] sm:$0xf]
        %v192 = vld [vmem:[%s153 + $0x14] sm:$0xf]
        %v193 = vld [vmem:[%s153 + $0x18] sm:$0xf]
        %v194 = vld [vmem:[%s153 + $0x1c] sm:$0xf]
        %v195 = vld [vmem:[%s153 + $0x20] sm:$0xf]
        %v196 = vld [vmem:[%s153 + $0x24] sm:$0xf]
        %v197 = vld [vmem:[%s153 + $0x28] sm:$0xf]
        %v198 = vld [vmem:[%s153 + $0x2c] sm:$0xf]
        %v211 = vunpack.c.l.b16 %v187
        %v212 = vunpack.c.l.b16 %v188
        %v213 = vunpack.c.l.b16 %v189
        %v214 = vunpack.c.l.b16 %v190
        %v215 = vunpack.c.l.b16 %v191
        %v216 = vunpack.c.l.b16 %v192
        %v217 = vunpack.c.l.b16 %v193
        %v218 = vunpack.c.l.b16 %v194
        %v219 = vunpack.c.l.b16 %v195
        %v220 = vunpack.c.l.b16 %v196
        %v221 = vunpack.c.l.b16 %v197
        %v222 = vunpack.c.l.b16 %v198
        %v223 = vpack.c.b16 %v212, %v211
        %v224 = vpack.c.b16 %v214, %v213
        %v225 = vpack.c.b16 %v216, %v215
        %v226 = vpack.c.b16 %v218, %v217
        %v227 = vpack.c.b16 %v220, %v219
        %v228 = vpack.c.b16 %v222, %v221
        %v235 = vunpack.c.l.b16 %v181
        %v236 = vunpack.c.l.b16 %v182
        %v237 = vunpack.c.l.b16 %v183
        %v238 = vunpack.c.l.b16 %v184
        %v239 = vunpack.c.l.b16 %v185
        %v240 = vunpack.c.l.b16 %v186
        %v241 = vpack.c.b16 %v236, %v235
        %v242 = vpack.c.b16 %v238, %v237
        %v243 = vpack.c.b16 %v240, %v239
        %vm247 = vcmask 392192
        %v249 = vsel %vm247, %v223, 0
        %v252 = vsel %vm247, %v224, 0
        %v255 = vsel %vm247, %v225, 0
        %v258 = vsel %vm247, %v226, 0
        %v261 = vsel %vm247, %v227, 0
        %v264 = vsel %vm247, %v228, 0
        %266 = vmatprep.subr.bf16.mxu0 0
        %267 = vmatpush1.bf16.msra.mxu0 %v241
        %268 = vmatprep.subr.bf16.mxu0 0
        %269 = vmatpush1.bf16.msra.mxu0 %v242
        %270 = vmatprep.subr.bf16.mxu0 0
        %271 = vmatpush1.bf16.msra.mxu0 %v243
        %272 = vmatprep.subr.bf16.mxu0 0
        %273 = vmatpush1.bf16.msra.mxu0 0
        %274 = vmatprep.subr.bf16.mxu0 0
        %275 = vmatpush1.bf16.msra.mxu0 0
        %276 = vmatprep.subr.bf16.mxu0 0
        %277 = vmatpush1.bf16.msra.mxu0 0
        %278 = vmatprep.subr.bf16.mxu0 0
        %279 = vmatpush1.bf16.msra.mxu0 0
        %280 = vmatprep.subr.bf16.mxu0 0
        %281 = vmatpush1.bf16.msra.mxu0 0
        %282 = vmatprep.subr.bf16.mxu0 0
        %283 = vmatpush1.bf16.msra.mxu0 0
        %284 = vmatprep.subr.bf16.mxu0 0
        %285 = vmatpush1.bf16.msra.mxu0 0
        %286 = vmatprep.subr.bf16.mxu0 0
        %287 = vmatpush1.bf16.msra.mxu0 0
        %288 = vmatprep.subr.bf16.mxu0 0
        %289 = vmatpush1.bf16.msra.mxu0 0
        %290 = vmatprep.subr.bf16.mxu0 0
        %291 = vmatpush1.bf16.msra.mxu0 0
        %292 = vmatprep.subr.bf16.mxu0 0
        %293 = vmatpush1.bf16.msra.mxu0 0
        %294 = vmatprep.subr.bf16.mxu0 0
        %295 = vmatpush1.bf16.msra.mxu0 0
        %296 = vmatprep.subr.bf16.mxu0 0
        %297 = vmatpush1.bf16.msra.mxu0 0
        %298 = vmatprep.mubr.bf16.mxu0 0
        %299 = vmatmul.mubr.bf16.gmra.mrb[0].mxu0 %v249
        %v300 = vpop.f32.mrb[0].mxu0
        %v301 = vadd.f32 0.0, %v300
        %v302 = vpop.f32.mrb[0].mxu0
        %v303 = vpop.f32.mrb[0].mxu0
        %v304 = vadd.f32 0.0, %v303
        %v305 = vpop.f32.mrb[0].mxu0
        %306 = vmatprep.mubr.bf16.mxu0 0
        %307 = vmatmul.mubr.bf16.gmra.mrb[0].mxu0 %v252
        %v308 = vpop.f32.mrb[0].mxu0
        %v309 = vadd.f32 0.0, %v308
        %v310 = vpop.f32.mrb[0].mxu0
        %v311 = vpop.f32.mrb[0].mxu0
        %v312 = vadd.f32 0.0, %v311
        %v313 = vpop.f32.mrb[0].mxu0
        %314 = vmatprep.mubr.bf16.mxu0 0
        %315 = vmatmul.mubr.bf16.gmra.mrb[0].mxu0 %v255
        %v316 = vpop.f32.mrb[0].mxu0
        %v317 = vadd.f32 0.0, %v316
        %v318 = vpop.f32.mrb[0].mxu0
        %v319 = vpop.f32.mrb[0].mxu0
        %v320 = vadd.f32 0.0, %v319
        %v321 = vpop.f32.mrb[0].mxu0
        %322 = vmatprep.mubr.bf16.mxu0 0
        %323 = vmatmul.mubr.bf16.gmra.mrb[0].mxu0 %v258
        %v324 = vpop.f32.mrb[0].mxu0
        %v325 = vadd.f32 0.0, %v324
        %v326 = vpop.f32.mrb[0].mxu0
        %v327 = vpop.f32.mrb[0].mxu0
        %v328 = vadd.f32 0.0, %v327
        %v329 = vpop.f32.mrb[0].mxu0
        %330 = vmatprep.mubr.bf16.mxu0 0
        %331 = vmatmul.mubr.bf16.gmra.mrb[0].mxu0 %v261
        %v332 = vpop.f32.mrb[0].mxu0
        %v333 = vadd.f32 0.0, %v332
        %v334 = vpop.f32.mrb[0].mxu0
        %v335 = vpop.f32.mrb[0].mxu0
        %v336 = vadd.f32 0.0, %v335
        %v337 = vpop.f32.mrb[0].mxu0
        %338 = vmatprep.mubr.bf16.mxu0 0
        %339 = vmatmul.mubr.bf16.gmra.mrb[0].mxu0 %v264
        %v340 = vpop.f32.mrb[0].mxu0
        %v341 = vadd.f32 0.0, %v340
        %v342 = vpop.f32.mrb[0].mxu0
        %v343 = vpop.f32.mrb[0].mxu0
        %v344 = vadd.f32 0.0, %v343
        %v345 = vpop.f32.mrb[0].mxu0
        %346 = vdwg.mxu0
        %v347 = vunpack.c.l.bf16 %v181
        %v348 = vunpack.c.l.bf16 %v182
        %v349 = vunpack.c.l.bf16 %v183
        %v350 = vunpack.c.l.bf16 %v184
        %v351 = vunpack.c.l.bf16 %v185
        %v352 = vunpack.c.l.bf16 %v186
        %v353 = vmul.f32 %v301, %v347
        %v354 = vmul.f32 %v304, %v348
        %v355 = vmul.f32 %v309, %v349
        %v356 = vmul.f32 %v312, %v350
        %v357 = vmul.f32 %v317, %v351
        %v358 = vmul.f32 %v320, %v352
        %v359 = vmul.f32 %v325, %v347
        %v360 = vmul.f32 %v328, %v348
        %v361 = vmul.f32 %v333, %v349
        %v362 = vmul.f32 %v336, %v350
        %v363 = vmul.f32 %v341, %v351
        %v364 = vmul.f32 %v344, %v352
        %v365 = vadd.f32 %v353, %v354
        %v366 = vadd.f32 %v365, %v355
        %v367 = vadd.f32 %v366, %v356
        %v368 = vadd.f32 %v367, %v357
        %v369 = vadd.f32 %v368, %v358
        %v370 = vrot.slane %v369, 4
        %v371 = vadd.f32 %v369, %v370
        %v372 = vrot.slane %v371, 2
        %v373 = vadd.f32 %v371, %v372
        %v374 = vrot.slane %v373, 1
        %v375 = vadd.f32 %v373, %v374
        %v376 = vadd.f32 %v359, %v360
        %v377 = vadd.f32 %v376, %v361
        %v378 = vadd.f32 %v377, %v362
        %v379 = vadd.f32 %v378, %v363
        %v380 = vadd.f32 %v379, %v364
        %v381 = vrot.slane %v380, 4
        %v382 = vadd.f32 %v380, %v381
        %v383 = vrot.slane %v382, 2
        %v384 = vadd.f32 %v382, %v383
        %v385 = vrot.slane %v384, 1
        %v386 = vadd.f32 %v384, %v385
        %v387 = vmul.f32 %v375, 0.0034602077
        %v388 = vmul.f32 %v386, 0.0034602077
        %389 = vst [vmem:[%s177] sm:$0x1] %v387
        %390 = vst [vmem:[%s177 + $0x1] sm:$0x1] %v388
        %s391 = sand.u32 %s75, 1
        %s392 = scalar_lea.sflag [#allocation4], %s391
        %s393 = sand.u32 %s75, 1
        %s394 = smul.addr %s393, 2
        %s395 = scalar_lea.vmem [#allocation7], %s394
        // Predicated region
        $region37: #{tpu_custom_call.1} parent=27 // pred_check
          %p396 = pneg %p85
        $region38: #{tpu_custom_call.1} parent=27 // pred_check_branch
          %398 = sbr.rel (%p396) target = $region40
        $region39: #{tpu_custom_call.1} parent=27 // pred_region
          %s399 = smul.u32 2, %s20
          %s401 = ssub.s32 32, 32
          %402 = vsyncadd %s392, %s401
          %s403 = smul.addr %s399, 16
          %s404 = scalar_lea.hbm %s2, %s403
          %s405 = sshll.u32 %s395, 4
          %s406 = int_to_ptr.vmem [resolvable:$true] %s405
          %411 = dma.vmem_to_hbm [thread:$0]  %s406, 32, %s404, %s392, 16, 16, 1
        $region40: #{tpu_custom_call.1} parent=27 // pred_fallthru
          _
      $region28: #{tpu_custom_call.1} parent=5 // pred_fallthru
        _
      %p412 = scmp.le.s32.totalorder 2, %s15
      // Predicated region
      $region41: #{tpu_custom_call.1} parent=5 // pred_check
        %p413 = pneg %p412
      $region42: #{tpu_custom_call.1} parent=5 // pred_check_branch
        %415 = sbr.rel (%p413) target = $region44
      $region43: #{tpu_custom_call.1} parent=5 // pred_region
        %s416 = ssub.s32 %s15, 2
        // Predicated region
        $region45: #{tpu_custom_call.1} parent=43 // pred_check
          %p417 = pneg %p91
        $region46: #{tpu_custom_call.1} parent=43 // pred_check_branch
          %419 = sbr.rel (%p417) target = $region48
        $region47: #{tpu_custom_call.1} parent=43 // pred_region
          %s420 = sand.u32 %s76, 1
          %s421 = scalar_lea.sflag [#allocation4], %s420
          %s422 = sand.u32 %s76, 1
          %s423 = smul.addr %s422, 2
          %s424 = scalar_lea.vmem [#allocation7], %s423
          %425 = dma.done %s421, 32
        $region48: #{tpu_custom_call.1} parent=43 // pred_fallthru
          _
      $region44: #{tpu_custom_call.1} parent=5 // pred_fallthru
        _
    $region6: #{tpu_custom_call.1} parent=1 // loop_footer
      %s19 = sadd.s32 1, %s15
    $region7: #{tpu_custom_call.1} parent=1 // loop_footer_branch
      %14 = sbr.rel target = $region3
    $region8: #{tpu_custom_call.1} parent=1 // loop_exit
      _
    %426 = vsyncpa [#allocation3], 1
    %s427 = scalar_lea.sflag [#allocation3], 1
    %428 = vsyncpa %s427, 1
    %429 = vsyncpa [#allocation6], 1
    %430 = vsyncpa [#allocation4], 1
    %s431 = scalar_lea.sflag [#allocation4], 1
    %432 = vsyncpa %s431, 1

</llo_original>
